<compile_context>
chip_gen: v7x
topology: tpu7x:2x2x1
jax: 0.10.0
libtpu: 0.0.40
codegen_flags: <defaults>
</compile_context>

<pallas_src>
import functools

import jax
import jax.numpy as jnp
from jax.experimental import pallas as pl
from jax.experimental.pallas import tpu as pltpu


def _round_up(x, m):
    return ((x + m - 1) // m) * m


def _pick_tiles(M, K, N, itemsize, tm_hint):
    """Choose (tm, tn) so the double-buffered working set fits comfortably in VMEM."""
    sub = {4: 8, 2: 16, 1: 32}.get(itemsize, 8)
    budget = 26 << 20  # headroom under the 32 MiB default scoped-VMEM limit

    def footprint(tm, tn):
        # 2x for double-buffered pipeline stages: activations + weights + bias + out.
        return 2 * itemsize * (tm * K + K * tn + tn + tm * tn)

    tm = max(sub, min(_round_up(tm_hint, sub), _round_up(M, sub)))
    tm = (tm // sub) * sub

    # Candidate N tiles: full N, then successive halvings that stay multiples of 128
    # and divide N exactly (so no N remainder handling is needed).
    tn_candidates = [N]
    d = N
    while d % 2 == 0 and (d // 2) >= 128 and (d // 2) % 128 == 0:
        d //= 2
        tn_candidates.append(d)

    for tn in tn_candidates:
        if footprint(tm, tn) <= budget:
            return tm, tn

    # Last resort: shrink the M tile as well.
    tn = tn_candidates[-1]
    while tm > sub and footprint(tm, tn) > budget:
        tm = max(sub, ((tm // 2) // sub) * sub)
    return tm, tn


def _feature_head_kernel(v_ref, m_ref, wv_ref, wm_ref, b_ref, o_ref):
    # v_ref: (tm, Dv)  m_ref: (tm, Dm)  wv_ref: (Dv, tn)  wm_ref: (Dm, tn)
    # b_ref: (1, tn)   o_ref: (tm, tn)
    acc = jnp.dot(v_ref[...], wv_ref[...], preferred_element_type=jnp.float32)
    acc = acc + jnp.dot(m_ref[...], wm_ref[...], preferred_element_type=jnp.float32)
    acc = acc + b_ref[...].astype(jnp.float32)
    o_ref[...] = jnp.maximum(acc, 0.0).astype(o_ref.dtype)


@functools.partial(jax.jit, static_argnames=("tm_hint",))
def feature_head_forward(visual_input, motion_input, weight, bias, *, tm_hint=512):
    """BaseFeatureHead forward (visual+motion, LINEAR_ENABLED=True, eval mode).

    visual_input: (B, T, Dv)   motion_input: (B, T, Dm)
    weight:       (Dv+Dm, d_model)   (transposed vs. PyTorch nn.Linear.weight)
    bias:         (d_model,)
    returns:      (B, T, d_model)
    """
    B, T, Dv = visual_input.shape
    Dm = motion_input.shape[-1]
    K = Dv + Dm
    N = weight.shape[1]
    M = B * T
    out_dtype = visual_input.dtype
    itemsize = jnp.dtype(out_dtype).itemsize

    v2d = visual_input.reshape(M, Dv)
    m2d = motion_input.reshape(M, Dm)
    w_v = weight[:Dv]
    w_m = weight[Dv:]
    b2d = bias.reshape(1, N)

    # TODO(synk): dropout (cfg.MODEL.FEATURE_HEAD.DROPOUT > 0) only acts in training
    # mode; the eval-mode forward modeled here is the identity.

    tm, tn = _pick_tiles(M, K, N, itemsize, tm_hint)

    # Pad ragged M up to a tile multiple; output rows are sliced back afterwards.
    M_pad = _round_up(M, tm)
    if M_pad != M:
        pad = M_pad - M
        v2d = jnp.pad(v2d, ((0, pad), (0, 0)))
        m2d = jnp.pad(m2d, ((0, pad), (0, 0)))

    n_tiles = N // tn
    m_tiles = M_pad // tm
    grid = (n_tiles, m_tiles)  # N outer (weights loaded once), M inner (streamed)

    cost = pl.CostEstimate(
        flops=2 * M_pad * K * N,
        transcendentals=0,
        bytes_accessed=itemsize * (M_pad * K * n_tiles + K * N + N + M_pad * N),
    )

    out2d = pl.pallas_call(
        _feature_head_kernel,
        out_shape=jax.ShapeDtypeStruct((M_pad, N), out_dtype),
        grid_spec=pltpu.PrefetchScalarGridSpec(
            num_scalar_prefetch=0,
            grid=grid,
            in_specs=[
                pl.BlockSpec((tm, Dv), lambda j, i: (i, 0)),   # visual rows
                pl.BlockSpec((tm, Dm), lambda j, i: (i, 0)),   # motion rows
                pl.BlockSpec((Dv, tn), lambda j, i: (0, j)),   # W_v column tile
                pl.BlockSpec((Dm, tn), lambda j, i: (0, j)),   # W_m column tile
                pl.BlockSpec((1, tn), lambda j, i: (0, j)),    # bias row
            ],
            out_specs=pl.BlockSpec((tm, tn), lambda j, i: (i, j)),
        ),
        compiler_params=pltpu.CompilerParams(
            dimension_semantics=("parallel", "parallel"),
        ),
        cost_estimate=cost,
    )(v2d, m2d, w_v, w_m, b2d)

    if M_pad != M:
        out2d = out2d[:M]
    return out2d.reshape(B, T, N)


def _reference_forward(visual_input, motion_input, weight, bias):
    fusion = jnp.concatenate([visual_input, motion_input], axis=-1)
    return jnp.maximum(fusion @ weight + bias, 0.0)


if __name__ == "__main__":
    # Small synthetic config: MODALITY='visual+motion', visual_size=64,
    # motion_size=64 (fusion_size=128), LINEAR_OUT_FEATURES=d_model=128.
    Dv, Dm = 64, 64
    d_model = 128
    fusion_size = Dv + Dm

    key = jax.random.PRNGKey(0)
    k_vis, k_mot, k_w, k_b = jax.random.split(key, 4)

    # Deterministic Linear params (PyTorch-style uniform(-1/sqrt(in), 1/sqrt(in))).
    bound = 1.0 / (fusion_size ** 0.5)
    weight = jax.random.uniform(
        k_w, (fusion_size, d_model), dtype=jnp.float32, minval=-bound, maxval=bound
    )
    bias = jax.random.uniform(
        k_b, (d_model,), dtype=jnp.float32, minval=-bound, maxval=bound
    )

    # Case 1: tile-aligned M.
    B, T = 2, 8
    visual = jax.random.normal(k_vis, (B, T, Dv), dtype=jnp.float32)
    motion = jax.random.normal(k_mot, (B, T, Dm), dtype=jnp.float32)
    out = jax.block_until_ready(feature_head_forward(visual, motion, weight, bias))
    ref = _reference_forward(visual, motion, weight, bias)
    assert out.shape == (B, T, d_model)
    assert jnp.allclose(out, ref, atol=1e-5, rtol=1e-5)

    # Case 2: ragged M (B*T = 21) exercises the padded-remainder path.
    B2, T2 = 3, 7
    visual2 = jax.random.normal(k_vis, (B2, T2, Dv), dtype=jnp.float32)
    motion2 = jax.random.normal(k_mot, (B2, T2, Dm), dtype=jnp.float32)
    out2 = jax.block_until_ready(feature_head_forward(visual2, motion2, weight, bias))
    ref2 = _reference_forward(visual2, motion2, weight, bias)
    assert out2.shape == (B2, T2, d_model)
    assert jnp.allclose(out2, ref2, atol=1e-5, rtol=1e-5)

    print("KERNEL_OK")
</pallas_src>

<mosaic_0001>
module attributes {stable_mosaic.version = 11 : i64} {
  func.func @_feature_head_kernel(%arg0: i32, %arg1: i32, %arg2: memref<16x64xf32, #tpu.memory_space<vmem>>, %arg3: memref<16x64xf32, #tpu.memory_space<vmem>>, %arg4: memref<64x128xf32, #tpu.memory_space<vmem>>, %arg5: memref<64x128xf32, #tpu.memory_space<vmem>>, %arg6: memref<1x128xf32, #tpu.memory_space<vmem>>, %arg7: memref<16x128xf32, #tpu.memory_space<vmem>>) attributes {dimension_semantics = [#tpu.dimension_semantics<parallel>, #tpu.dimension_semantics<parallel>], iteration_bounds = array<i64: 1, 1>, scalar_prefetch = 0 : i64, scratch_operands = 0 : i64, tpu.core_type = #tpu.core_type<tc>, window_params = [{transform_indices = @transform_0, window_bounds = array<i64: 16, 64>}, {transform_indices = @transform_1, window_bounds = array<i64: 16, 64>}, {transform_indices = @transform_2, window_bounds = array<i64: 64, 128>}, {transform_indices = @transform_3, window_bounds = array<i64: 64, 128>}, {transform_indices = @transform_4, window_bounds = array<i64: 1, 128>}, {transform_indices = @transform_5, window_bounds = array<i64: 16, 128>}]} {
    %c0 = arith.constant 0 : index
    %c0_0 = arith.constant 0 : index
    %0 = vector.load %arg2[%c0, %c0_0] : memref<16x64xf32, #tpu.memory_space<vmem>>, vector<16x64xf32>
    %c0_1 = arith.constant 0 : index
    %c0_2 = arith.constant 0 : index
    %1 = vector.load %arg4[%c0_1, %c0_2] : memref<64x128xf32, #tpu.memory_space<vmem>>, vector<64x128xf32>
    %cst = arith.constant dense<0.000000e+00> : vector<16x128xf32>
    %2 = tpu.matmul %0, %1, %cst {dimension_numbers = #tpu.dot_dimension_numbers<[1], [0], [0], [1], [0, 0, 1, 1], [], []>} : vector<16x64xf32>, vector<64x128xf32>, vector<16x128xf32> -> vector<16x128xf32>
    %c0_3 = arith.constant 0 : index
    %c0_4 = arith.constant 0 : index
    %3 = vector.load %arg3[%c0_3, %c0_4] : memref<16x64xf32, #tpu.memory_space<vmem>>, vector<16x64xf32>
    %c0_5 = arith.constant 0 : index
    %c0_6 = arith.constant 0 : index
    %4 = vector.load %arg5[%c0_5, %c0_6] : memref<64x128xf32, #tpu.memory_space<vmem>>, vector<64x128xf32>
    %cst_7 = arith.constant dense<0.000000e+00> : vector<16x128xf32>
    %5 = tpu.matmul %3, %4, %cst_7 {dimension_numbers = #tpu.dot_dimension_numbers<[1], [0], [0], [1], [0, 0, 1, 1], [], []>} : vector<16x64xf32>, vector<64x128xf32>, vector<16x128xf32> -> vector<16x128xf32>
    %6 = arith.addf %2, %5 : vector<16x128xf32>
    %c0_8 = arith.constant 0 : index
    %c0_9 = arith.constant 0 : index
    %7 = vector.load %arg6[%c0_8, %c0_9] : memref<1x128xf32, #tpu.memory_space<vmem>>, vector<1x128xf32>
    %8 = vector.broadcast %7 : vector<1x128xf32> to vector<16x128xf32>
    %9 = arith.addf %6, %8 : vector<16x128xf32>
    %cst_10 = arith.constant 0.000000e+00 : f32
    %10 = vector.broadcast %cst_10 : f32 to vector<16x128xf32>
    %11 = arith.maximumf %9, %10 : vector<16x128xf32>
    %c0_11 = arith.constant 0 : index
    %c0_12 = arith.constant 0 : index
    %12 = vector.load %arg7[%c0_11, %c0_12] : memref<16x128xf32, #tpu.memory_space<vmem>>, vector<16x128xf32>
    tpu.vector_store %arg7[%c0_11, %c0_12], %11 {strides = array<i32>} : memref<16x128xf32, #tpu.memory_space<vmem>>, vector<16x128xf32>,
    return
  }
  func.func @transform_0(%arg0: i32, %arg1: i32) -> (i32, i32) {
    %c0_i32 = arith.constant 0 : i32
    %c0_i32_0 = arith.constant 0 : i32
    return %arg1, %c0_i32 : i32, i32
  }
  func.func @transform_1(%arg0: i32, %arg1: i32) -> (i32, i32) {
    %c0_i32 = arith.constant 0 : i32
    %c0_i32_0 = arith.constant 0 : i32
    return %arg1, %c0_i32 : i32, i32
  }
  func.func @transform_2(%arg0: i32, %arg1: i32) -> (i32, i32) {
    %c0_i32 = arith.constant 0 : i32
    %c0_i32_0 = arith.constant 0 : i32
    return %c0_i32, %arg0 : i32, i32
  }
  func.func @transform_3(%arg0: i32, %arg1: i32) -> (i32, i32) {
    %c0_i32 = arith.constant 0 : i32
    %c0_i32_0 = arith.constant 0 : i32
    return %c0_i32, %arg0 : i32, i32
  }
  func.func @transform_4(%arg0: i32, %arg1: i32) -> (i32, i32) {
    %c0_i32 = arith.constant 0 : i32
    %c0_i32_0 = arith.constant 0 : i32
    return %c0_i32, %arg0 : i32, i32
  }
  func.func @transform_5(%arg0: i32, %arg1: i32) -> (i32, i32) {
    %c0_i32 = arith.constant 0 : i32
    return %arg1, %arg0 : i32, i32
  }
}

</mosaic_0001>

<llo_original>
// kernel: feature_head_forward.1
$region0: #{feature_head_forward.1}
  #allocation0 [shape = 'u32[]', space=smem, size = 0x4, offset = 0x4, fixed_abs, tag = 'smem constant byte address 0x4 - core index']
  #allocation1 [shape = 'u32[144,128]{1,0:T(1,128)}', space=vmem, size = 0x12000, scoped, tag = 'internal scratch']
  %s0 = inlined_call_operand.vmem [shape: f32[16,64], index: 0, kind: input, shape index: {}]
  %s1 = inlined_call_operand.vmem [shape: f32[16,64], index: 1, kind: input, shape index: {}]
  %s2 = inlined_call_operand.vmem [shape: f32[64,128], index: 2, kind: input, shape index: {}]
  %s3 = inlined_call_operand.vmem [shape: f32[64,128], index: 3, kind: input, shape index: {}]
  %s4 = inlined_call_operand.vmem [shape: f32[1,128], index: 4, kind: input, shape index: {}]
  %s5 = inlined_call_operand.hbm [shape: f32[16,128], index: 5, kind: output, shape index: {}]
  %s6 = sld [smem:[#allocation0]]
  $region30: #{feature_head_forward.1} parent=0
    _
  %s8 = ssub.s32 1, %s6
  %s9 = scalar_select 0, %s8, %s6
  $region1: #{feature_head_forward.1} parent=0
    #allocation2 [shape = 'u8[8192]{0}', space=vmem, size = 0x2000, scoped, tag = 'output window, operand 0, single buffered']
    #allocation3 [shape = 's32[1]{0}', space=sflag, size = 0x4, scoped, tag = 'scoped memory for feature_head_forward.1']
    %10 = vsyncpa [#allocation3], 0
    // Predicated region
    $region2: #{feature_head_forward.1} parent=1 // pred_check
      _
    $region3: #{feature_head_forward.1} parent=1 // pred_check_branch
      %12 = sbr.rel (0) target = $region5
    $region4: #{feature_head_forward.1} parent=1 // pred_region
      _
    $region5: #{feature_head_forward.1} parent=1 // pred_fallthru
      _
    // Predicated region
    $region6: #{feature_head_forward.1} parent=1 // pred_check
      _
    $region7: #{feature_head_forward.1} parent=1 // pred_check_branch
      %14 = sbr.rel (0) target = $region9
    $region8: #{feature_head_forward.1} parent=1 // pred_region
      _
    $region9: #{feature_head_forward.1} parent=1 // pred_fallthru
      _
    // Predicated region
    $region10: #{feature_head_forward.1} parent=1 // pred_check
      _
    $region11: #{feature_head_forward.1} parent=1 // pred_check_branch
      %16 = sbr.rel (0) target = $region13
    $region12: #{feature_head_forward.1} parent=1 // pred_region
      _
    $region13: #{feature_head_forward.1} parent=1 // pred_fallthru
      _
    // Predicated region
    $region14: #{feature_head_forward.1} parent=1 // pred_check
      _
    $region15: #{feature_head_forward.1} parent=1 // pred_check_branch
      %18 = sbr.rel (0) target = $region17
    $region16: #{feature_head_forward.1} parent=1 // pred_region
      _
    $region17: #{feature_head_forward.1} parent=1 // pred_fallthru
      _
    // Predicated region
    $region18: #{feature_head_forward.1} parent=1 // pred_check
      _
    $region19: #{feature_head_forward.1} parent=1 // pred_check_branch
      %20 = sbr.rel (0) target = $region21
    $region20: #{feature_head_forward.1} parent=1 // pred_region
      _
    $region21: #{feature_head_forward.1} parent=1 // pred_fallthru
      _
    %v21 = vld [vmem:[%s0] sm:$0xff]
    %v22 = vld [vmem:[%s0 + $0x8] sm:$0xff]
    %v23 = vld [vmem:[%s2] sm:$0xff]
    %v24 = vld [vmem:[%s2 + $0x8] sm:$0xff]
    %v25 = vld [vmem:[%s2 + $0x10] sm:$0xff]
    %v26 = vld [vmem:[%s2 + $0x18] sm:$0xff]
    %v27 = vld [vmem:[%s2 + $0x20] sm:$0xff]
    %v28 = vld [vmem:[%s2 + $0x28] sm:$0xff]
    %v29 = vld [vmem:[%s2 + $0x30] sm:$0xff]
    %v30 = vld [vmem:[%s2 + $0x38] sm:$0xff]
    %v31 = vld [vmem:[%s1] sm:$0xff]
    %v32 = vld [vmem:[%s1 + $0x8] sm:$0xff]
    %v33 = vld [vmem:[%s3] sm:$0xff]
    %v34 = vld [vmem:[%s3 + $0x8] sm:$0xff]
    %v35 = vld [vmem:[%s3 + $0x10] sm:$0xff]
    %v36 = vld [vmem:[%s3 + $0x18] sm:$0xff]
    %v37 = vld [vmem:[%s3 + $0x20] sm:$0xff]
    %v38 = vld [vmem:[%s3 + $0x28] sm:$0xff]
    %v39 = vld [vmem:[%s3 + $0x30] sm:$0xff]
    %v40 = vld [vmem:[%s3 + $0x38] sm:$0xff]
    %vm41 = vcmask 523264
    %v43 = vsel %vm41, %v31, 0
    %v46 = vsel %vm41, %v32, 0
    %48 = vmatprep.subr.mxu0 0.0
    %49 = vmatpush1.msra.mxu0 %v33
    %50 = vmatprep.subr.mxu0 0.0
    %51 = vmatpush1.msra.mxu0 %v34
    %52 = vmatprep.subr.mxu0 0.0
    %53 = vmatpush1.msra.mxu0 %v35
    %54 = vmatprep.subr.mxu0 0.0
    %55 = vmatpush1.msra.mxu0 %v36
    %56 = vmatprep.subr.mxu0 0.0
    %57 = vmatpush1.msra.mxu0 %v37
    %58 = vmatprep.subr.mxu0 0.0
    %59 = vmatpush1.msra.mxu0 %v38
    %60 = vmatprep.subr.mxu0 0.0
    %61 = vmatpush1.msra.mxu0 %v39
    %62 = vmatprep.subr.mxu0 0.0
    %63 = vmatpush1.msra.mxu0 %v40
    %64 = vmatprep.subr.mxu0 0.0
    %65 = vmatpush1.msra.mxu0 0.0
    %66 = vmatprep.subr.mxu0 0.0
    %67 = vmatpush1.msra.mxu0 0.0
    %68 = vmatprep.subr.mxu0 0.0
    %69 = vmatpush1.msra.mxu0 0.0
    %70 = vmatprep.subr.mxu0 0.0
    %71 = vmatpush1.msra.mxu0 0.0
    %72 = vmatprep.subr.mxu0 0.0
    %73 = vmatpush1.msra.mxu0 0.0
    %74 = vmatprep.subr.mxu0 0.0
    %75 = vmatpush1.msra.mxu0 0.0
    %76 = vmatprep.subr.mxu0 0.0
    %77 = vmatpush1.msra.mxu0 0.0
    %78 = vmatprep.subr.mxu0 0.0
    %79 = vmatpush1.msra.mxu0 0.0
    %80 = vmatprep.subr.mxu0 0.0
    %81 = vmatpush1.msra.mxu0 0.0
    %82 = vmatprep.subr.mxu0 0.0
    %83 = vmatpush1.msra.mxu0 0.0
    %84 = vmatprep.subr.mxu0 0.0
    %85 = vmatpush1.msra.mxu0 0.0
    %86 = vmatprep.subr.mxu0 0.0
    %87 = vmatpush1.msra.mxu0 0.0
    %88 = vmatprep.subr.mxu0 0.0
    %89 = vmatpush1.msra.mxu0 0.0
    %90 = vmatprep.subr.mxu0 0.0
    %91 = vmatpush1.msra.mxu0 0.0
    %92 = vmatprep.subr.mxu0 0.0
    %93 = vmatpush1.msra.mxu0 0.0
    %94 = vmatprep.subr.mxu0 0.0
    %95 = vmatpush1.msra.mxu0 0.0
    %96 = vmatprep.subr.mxu0 0.0
    %97 = vmatpush1.msra.mxu0 0.0
    %98 = vmatprep.subr.mxu0 0.0
    %99 = vmatpush1.msra.mxu0 0.0
    %100 = vmatprep.subr.mxu0 0.0
    %101 = vmatpush1.msra.mxu0 0.0
    %102 = vmatprep.subr.mxu0 0.0
    %103 = vmatpush1.msra.mxu0 0.0
    %104 = vmatprep.subr.mxu0 0.0
    %105 = vmatpush1.msra.mxu0 0.0
    %106 = vmatprep.subr.mxu0 0.0
    %107 = vmatpush1.msra.mxu0 0.0
    %108 = vmatprep.subr.mxu0 0.0
    %109 = vmatpush1.msra.mxu0 0.0
    %110 = vmatprep.subr.mxu0 0.0
    %111 = vmatpush1.msra.mxu0 0.0
    %112 = vmatprep.mubr.f32.mxu0 0.0
    %113 = vmatmul.mubr.f32.gmra.mrb[0].mxu0 %v43
    %v114 = vpop.f32.mrb[0].mxu0
    %v115 = vadd.f32 0.0, %v114
    %v116 = vpop.f32.mrb[0].mxu0
    %117 = vmatprep.mubr.f32.mxu0 0.0
    %118 = vmatmul.mubr.f32.gmra.mrb[0].mxu0 %v46
    %v119 = vpop.f32.mrb[0].mxu0
    %v120 = vadd.f32 0.0, %v119
    %v121 = vpop.f32.mrb[0].mxu0
    %122 = vdwg.mxu0
    %v124 = vsel %vm41, %v21, 0
    %v127 = vsel %vm41, %v22, 0
    %129 = vmatprep.subr.mxu0 0.0
    %130 = vmatpush1.msra.mxu0 %v23
    %131 = vmatprep.subr.mxu0 0.0
    %132 = vmatpush1.msra.mxu0 %v24
    %133 = vmatprep.subr.mxu0 0.0
    %134 = vmatpush1.msra.mxu0 %v25
    %135 = vmatprep.subr.mxu0 0.0
    %136 = vmatpush1.msra.mxu0 %v26
    %137 = vmatprep.subr.mxu0 0.0
    %138 = vmatpush1.msra.mxu0 %v27
    %139 = vmatprep.subr.mxu0 0.0
    %140 = vmatpush1.msra.mxu0 %v28
    %141 = vmatprep.subr.mxu0 0.0
    %142 = vmatpush1.msra.mxu0 %v29
    %143 = vmatprep.subr.mxu0 0.0
    %144 = vmatpush1.msra.mxu0 %v30
    %145 = vmatprep.subr.mxu0 0.0
    %146 = vmatpush1.msra.mxu0 0.0
    %147 = vmatprep.subr.mxu0 0.0
    %148 = vmatpush1.msra.mxu0 0.0
    %149 = vmatprep.subr.mxu0 0.0
    %150 = vmatpush1.msra.mxu0 0.0
    %151 = vmatprep.subr.mxu0 0.0
    %152 = vmatpush1.msra.mxu0 0.0
    %153 = vmatprep.subr.mxu0 0.0
    %154 = vmatpush1.msra.mxu0 0.0
    %155 = vmatprep.subr.mxu0 0.0
    %156 = vmatpush1.msra.mxu0 0.0
    %157 = vmatprep.subr.mxu0 0.0
    %158 = vmatpush1.msra.mxu0 0.0
    %159 = vmatprep.subr.mxu0 0.0
    %160 = vmatpush1.msra.mxu0 0.0
    %161 = vmatprep.subr.mxu0 0.0
    %162 = vmatpush1.msra.mxu0 0.0
    %163 = vmatprep.subr.mxu0 0.0
    %164 = vmatpush1.msra.mxu0 0.0
    %165 = vmatprep.subr.mxu0 0.0
    %166 = vmatpush1.msra.mxu0 0.0
    %167 = vmatprep.subr.mxu0 0.0
    %168 = vmatpush1.msra.mxu0 0.0
    %169 = vmatprep.subr.mxu0 0.0
    %170 = vmatpush1.msra.mxu0 0.0
    %171 = vmatprep.subr.mxu0 0.0
    %172 = vmatpush1.msra.mxu0 0.0
    %173 = vmatprep.subr.mxu0 0.0
    %174 = vmatpush1.msra.mxu0 0.0
    %175 = vmatprep.subr.mxu0 0.0
    %176 = vmatpush1.msra.mxu0 0.0
    %177 = vmatprep.subr.mxu0 0.0
    %178 = vmatpush1.msra.mxu0 0.0
    %179 = vmatprep.subr.mxu0 0.0
    %180 = vmatpush1.msra.mxu0 0.0
    %181 = vmatprep.subr.mxu0 0.0
    %182 = vmatpush1.msra.mxu0 0.0
    %183 = vmatprep.subr.mxu0 0.0
    %184 = vmatpush1.msra.mxu0 0.0
    %185 = vmatprep.subr.mxu0 0.0
    %186 = vmatpush1.msra.mxu0 0.0
    %187 = vmatprep.subr.mxu0 0.0
    %188 = vmatpush1.msra.mxu0 0.0
    %189 = vmatprep.subr.mxu0 0.0
    %190 = vmatpush1.msra.mxu0 0.0
    %191 = vmatprep.subr.mxu0 0.0
    %192 = vmatpush1.msra.mxu0 0.0
    %193 = vmatprep.mubr.f32.mxu0 0.0
    %194 = vmatmul.mubr.f32.gmra.mrb[0].mxu0 %v124
    %v195 = vpop.f32.mrb[0].mxu0
    %v196 = vadd.f32 %v115, %v195
    %v197 = vpop.f32.mrb[0].mxu0
    %198 = vmatprep.mubr.f32.mxu0 0.0
    %199 = vmatmul.mubr.f32.gmra.mrb[0].mxu0 %v127
    %v200 = vpop.f32.mrb[0].mxu0
    %v201 = vadd.f32 %v120, %v200
    %v202 = vpop.f32.mrb[0].mxu0
    %203 = vdwg.mxu0
    %v204 = vld [vmem:[%s4] sm:$0x1]
    %v206 = vlaneseq
    %v207 = vshrl.u32 %v206, 7
    %v208 = vsub.s32 0, %v207
    %v209 = vrot.slane %v204, %v208
    %v211 = vadd.f32 %v196, %v209
    %v212 = vadd.f32 %v201, %v209
    %v213 = vmax.f32 %v211, 0.0
    %v214 = vmax.f32 %v212, 0.0
    %215 = vst [vmem:[#allocation2] sm:$0xff] %v213
    %216 = vst [vmem:[#allocation2 + $0x8] sm:$0xff] %v214
    // Predicated region
    $region22: #{feature_head_forward.1} parent=1 // pred_check
      _
    $region23: #{feature_head_forward.1} parent=1 // pred_check_branch
      %218 = sbr.rel (0) target = $region25
    $region24: #{feature_head_forward.1} parent=1 // pred_region
      %s220 = ssub.s32 256, 256
      %221 = vsyncadd [#allocation3], %s220
      %s222 = sshll.u32 [#allocation2], 4
      %s223 = int_to_ptr.vmem [resolvable:$true] %s222
      %228 = dma.vmem_to_hbm [thread:$0]  %s223, 256, %s5, [#allocation3], 128, 128, 8
    $region25: #{feature_head_forward.1} parent=1 // pred_fallthru
      _
    // Predicated region
    $region26: #{feature_head_forward.1} parent=1 // pred_check
      _
    $region27: #{feature_head_forward.1} parent=1 // pred_check_branch
      %230 = sbr.rel (0) target = $region29
    $region28: #{feature_head_forward.1} parent=1 // pred_region
      %231 = dma.done [#allocation3], 256
    $region29: #{feature_head_forward.1} parent=1 // pred_fallthru
      _
    %232 = vsyncpa [#allocation3], 1

</llo_original>
